<compile_context>
chip_gen: v7x
topology: tpu7x:2x2x1
jax: 0.10.0
libtpu: 0.0.40
codegen_flags: <defaults>
</compile_context>

<pallas_src>
import functools

import numpy as np
import jax
import jax.numpy as jnp
from jax.experimental import pallas as pl
from jax.experimental.pallas import tpu as pltpu


# Max ROIs per grid block.  VMEM math (lane padding included): (TN, 5) f32
# pads its last dim to 128 lanes -> 512 B/ROI per ref; input + output blocks,
# each double-buffered, cost 4 * 512 B = 2 KiB/ROI.  4096 ROIs -> 8 MiB.
_MAX_TILE_ROIS = 4096


def _descale_kernel(inv_scales_ref, rois_ref, out_ref, *, num_images):
    """out = rois with coord columns (1:5) scaled by 1/im_scale[batch_idx].

    inv_scales_ref : SMEM (B,)     float32  precomputed 1/im_scale per image
    rois_ref       : VMEM (TN, 5)  float32  rows = [batch_idx, x1, y1, x2, y2]
    out_ref        : VMEM (TN, 5)  float32  same rows, coords de-scaled
    """
    rois = rois_ref[...]                                      # (TN, 5)
    # Integer batch-index compare (no float-equality fragility).  Indices
    # outside [0, num_images) silently fall back to image 0's scale.
    bidx = rois[:, 0:1].astype(jnp.int32)                     # (TN, 1)
    inv = jnp.full(bidx.shape, inv_scales_ref[0], dtype=jnp.float32)
    for i in range(1, num_images):                            # B is tiny (1-2)
        inv = jnp.where(bidx == i, inv_scales_ref[i], inv)
    # Column 0 (batch idx) is multiplied by 1.0 so the whole block is written
    # back full-width in one store, with no lane-offset slicing anywhere.
    lane = jax.lax.broadcasted_iota(jnp.int32, rois.shape, dimension=1)
    mult = jnp.where(lane == 0, jnp.float32(1.0), inv)        # (TN, 5)
    out_ref[...] = (rois * mult).astype(out_ref.dtype)


def _tile_rois(n, max_tile):
    """(tile_n, padded_n): one full-extent block unless n exceeds the cap."""
    if n <= max_tile:
        return n, n                           # single block, no grid overhead
    return max_tile, max_tile * pl.cdiv(n, max_tile)


def descale_rois(det_rois, im_scales, *, max_tile_rois=_MAX_TILE_ROIS):
    """De-scale ROI coordinates back to raw-image space in one Pallas pass.

    det_rois : (N, 5) f32  rows = [batch_idx, x1, y1, x2, y2] (scaled coords)
    im_scales: (B,)   f32  per-image scale factors (im_info[:, 2])
    returns  : (N, 5) f32  same table with columns 1:5 divided by each ROI's
                           image scale (column 0 unchanged)
    """
    n, c = det_rois.shape
    assert c == 5, "ROIs must be (N, 5) = [batch_idx, x1, y1, x2, y2]"
    assert n > 0
    num_images = int(im_scales.shape[0])

    # Scalar prep once; matches the original's 1/scale-then-multiply exactly.
    inv_scales = (1.0 / im_scales).astype(jnp.float32)        # (B,) -> SMEM

    tile_n, n_pad = _tile_rois(n, max_tile_rois)
    rois = det_rois
    if n_pad != n:                                            # large-N path only
        rois = jnp.pad(det_rois, ((0, n_pad - n), (0, 0)))

    kernel = functools.partial(_descale_kernel, num_images=num_images)
    out = pl.pallas_call(
        kernel,
        out_shape=jax.ShapeDtypeStruct((n_pad, 5), det_rois.dtype),
        grid=(n_pad // tile_n,),
        in_specs=[
            pl.BlockSpec(memory_space=pltpu.MemorySpace.SMEM),   # inv_scales
            pl.BlockSpec((tile_n, 5), lambda j: (j, 0)),         # ROI rows
        ],
        out_specs=pl.BlockSpec((tile_n, 5), lambda j: (j, 0)),
        # "parallel" lets the compiler shard grid steps across TensorCores on
        # v7x when N is large enough to produce >=2 blocks; on v5e/v6e small N
        # uses a single block so there is no serial grid-step overhead at all.
        compiler_params=pltpu.CompilerParams(
            dimension_semantics=("parallel",)),
    )(inv_scales, rois)
    return out if n_pad == n else out[:n]


def single_scale_relpn_forward(det_rois, im_info, num_images=None):
    """Mirror of single_scale_relpn_outputs.forward.

    Runs the Pallas de-scale kernel once over all ROIs, then does the
    per-image split on host from a SINGLE device->host transfer (the original
    module stores per-roidb-entry numpy arrays, so the split must live on
    host).  Returns (return_dict, descaled_rois_device).
    """
    if num_images is None:
        num_images = int(im_info.shape[0])
    im_scales = im_info[:, 2]

    descaled_dev = descale_rois(det_rois, im_scales)             # (N, 5) device
    descaled_np = np.asarray(jax.block_until_ready(descaled_dev))  # one sync/transfer

    batch_idx = np.rint(descaled_np[:, 0]).astype(np.int64)     # int split
    obj_box_list = [descaled_np[batch_idx == i, 1:] for i in range(num_images)]

    return_dict = {
        "obj_boxes_per_image": obj_box_list,                    # entry['obj_boxes']
        # TODO(synk): roi_data.fast_rcnn_rel.add_rel_blobs needs roidb ground
        # truth (prd_gt_cls / obj_gt_cls) and host-side relation-pair sampling;
        # it has no Pallas equivalent.
        "obj_rois": [],
        "rel_rois": [],
        "prd_gt_cls": [],
        "obj_gt_cls": [],
    }
    return return_dict, descaled_dev


if __name__ == "__main__":
    key = jax.random.PRNGKey(0)

    num_images = 2                                 # B
    rois_per_image = 8
    n_rois = num_images * rois_per_image           # N = 16

    # det_rois: (N, 5) = [batch_idx, x1, y1, x2, y2] in *scaled* image coords.
    coords = jax.random.uniform(key, (n_rois, 4), jnp.float32,
                                minval=0.0, maxval=64.0)
    batch_col = jnp.repeat(jnp.arange(num_images, dtype=jnp.float32),
                           rois_per_image)[:, None]
    det_rois = jnp.concatenate([batch_col, coords], axis=1)     # (16, 5)

    # im_info: (B, 3) = [height, width, scale]
    im_info = jnp.array([[96.0, 96.0, 1.5],
                         [128.0, 128.0, 2.0]], dtype=jnp.float32)

    out_dict, descaled_dev = single_scale_relpn_forward(det_rois, im_info,
                                                        num_images)
    descaled = np.asarray(jax.block_until_ready(descaled_dev))

    # Pure-numpy reference of the original semantics.
    det_np = np.asarray(det_rois)
    scales_np = np.asarray(im_info)[:, 2]
    ref = det_np.copy()
    for i in range(num_images):
        idx = np.where(det_np[:, 0] == i)[0]
        ref[idx, 1:] = det_np[idx, 1:] * (1.0 / scales_np[i])
    np.testing.assert_allclose(descaled, ref, rtol=1e-5, atol=1e-5)

    assert len(out_dict["obj_boxes_per_image"]) == num_images
    assert out_dict["obj_boxes_per_image"][0].shape == (rois_per_image, 4)
    np.testing.assert_allclose(out_dict["obj_boxes_per_image"][1],
                               ref[rois_per_image:, 1:], rtol=1e-5, atol=1e-5)

    # Also exercise the multi-block + padded (pl.cdiv) path at tiny sizes.
    n2 = 20                                                     # not % 8
    coords2 = jax.random.uniform(jax.random.PRNGKey(1), (n2, 4), jnp.float32,
                                 minval=0.0, maxval=64.0)
    batch2 = (jnp.arange(n2, dtype=jnp.float32) % num_images)[:, None]
    rois2 = jnp.concatenate([batch2, coords2], axis=1)          # (20, 5)
    out2 = np.asarray(jax.block_until_ready(
        descale_rois(rois2, im_info[:, 2], max_tile_rois=8)))
    det2 = np.asarray(rois2)
    ref2 = det2.copy()
    for i in range(num_images):
        idx = np.where(det2[:, 0] == i)[0]
        ref2[idx, 1:] = det2[idx, 1:] * (1.0 / scales_np[i])
    np.testing.assert_allclose(out2, ref2, rtol=1e-5, atol=1e-5)

    print("KERNEL_OK")
</pallas_src>

<mosaic_0001>
module attributes {stable_mosaic.version = 11 : i64} {
  func.func @_descale_kernel(%arg0: i32, %arg1: memref<2xf32, #tpu.memory_space<smem>>, %arg2: memref<16x5xf32, #tpu.memory_space<vmem>>, %arg3: memref<16x5xf32, #tpu.memory_space<vmem>>) attributes {dimension_semantics = [#tpu.dimension_semantics<parallel>], iteration_bounds = array<i64: 1>, scalar_prefetch = 0 : i64, scratch_operands = 0 : i64, tpu.core_type = #tpu.core_type<tc>, window_params = [{transform_indices = @transform_0, window_bounds = array<i64: 2>}, {transform_indices = @transform_1, window_bounds = array<i64: 16, 5>}, {transform_indices = @transform_2, window_bounds = array<i64: 16, 5>}]} {
    %c0 = arith.constant 0 : index
    %c0_0 = arith.constant 0 : index
    %0 = vector.load %arg2[%c0, %c0_0] : memref<16x5xf32, #tpu.memory_space<vmem>>, vector<16x5xf32>
    %1 = vector.extract_strided_slice %0 {offsets = [0, 0], sizes = [16, 1], strides = [1, 1]} : vector<16x5xf32> to vector<16x1xf32>
    %2 = arith.fptosi %1 : vector<16x1xf32> to vector<16x1xi32>
    %c0_1 = arith.constant 0 : index
    %3 = memref.load %arg1[%c0_1] : memref<2xf32, #tpu.memory_space<smem>>
    %4 = vector.broadcast %3 : f32 to vector<16x1xf32>
    %c1_i32 = arith.constant 1 : i32
    %5 = vector.broadcast %c1_i32 : i32 to vector<16x1xi32>
    %6 = arith.cmpi eq, %2, %5 : vector<16x1xi32>
    %c1 = arith.constant 1 : index
    %7 = memref.load %arg1[%c1] : memref<2xf32, #tpu.memory_space<smem>>
    %8 = vector.broadcast %7 : f32 to vector<16x1xf32>
    %9 = arith.select %6, %8, %4 : vector<16x1xi1>, vector<16x1xf32>
    %10 = tpu.iota {dimensions = array<i32: 1>} : vector<16x5xi32>
    %c0_i32 = arith.constant 0 : i32
    %11 = vector.broadcast %c0_i32 : i32 to vector<16x5xi32>
    %12 = arith.cmpi eq, %10, %11 : vector<16x5xi32>
    %cst = arith.constant 1.000000e+00 : f32
    %13 = vector.broadcast %cst : f32 to vector<16x5xf32>
    %14 = vector.shape_cast %9 : vector<16x1xf32> to vector<16x1xf32>
    %15 = vector.broadcast %14 : vector<16x1xf32> to vector<16x5xf32>
    %16 = arith.select %12, %13, %15 : vector<16x5xi1>, vector<16x5xf32>
    %17 = arith.mulf %0, %16 : vector<16x5xf32>
    %c0_2 = arith.constant 0 : index
    %c0_3 = arith.constant 0 : index
    %18 = vector.load %arg3[%c0_2, %c0_3] : memref<16x5xf32, #tpu.memory_space<vmem>>, vector<16x5xf32>
    tpu.vector_store %arg3[%c0_2, %c0_3], %17 {strides = array<i32>} : memref<16x5xf32, #tpu.memory_space<vmem>>, vector<16x5xf32>,
    return
  }
  func.func @transform_0(%arg0: i32) -> i32 {
    %c0_i32 = arith.constant 0 : i32
    %c0_i32_0 = arith.constant 0 : i32
    return %c0_i32 : i32
  }
  func.func @transform_1(%arg0: i32) -> (i32, i32) {
    %c0_i32 = arith.constant 0 : i32
    %c0_i32_0 = arith.constant 0 : i32
    return %arg0, %c0_i32 : i32, i32
  }
  func.func @transform_2(%arg0: i32) -> (i32, i32) {
    %c0_i32 = arith.constant 0 : i32
    %c0_i32_0 = arith.constant 0 : i32
    return %arg0, %c0_i32 : i32, i32
  }
}

</mosaic_0001>

<llo_original>
// kernel: tpu_custom_call.1
$region0: #{tpu_custom_call.1}
  #allocation0 [shape = 'u32[]', space=smem, size = 0x4, offset = 0x4, fixed_abs, tag = 'smem constant byte address 0x4 - core index']
  #allocation1 [shape = 'u32[144,128]{1,0:T(1,128)}', space=vmem, size = 0x12000, scoped, tag = 'internal scratch']
  %s0 = inlined_call_operand.vmem [shape: f32[2], index: 0, kind: input, shape index: {}]
  %s1 = inlined_call_operand.vmem [shape: f32[16,5], index: 1, kind: input, shape index: {}]
  %s2 = inlined_call_operand.vmem [shape: f32[16,5], index: 2, kind: output, shape index: {}]
  %s3 = sld [smem:[#allocation0]]
  $region22: #{tpu_custom_call.1} parent=0
    _
  %s5 = ssub.s32 1, %s3
  %s6 = scalar_select 0, %s5, %s3
  $region1: #{tpu_custom_call.1} parent=0
    #allocation2 [shape = 'u8[512]{0}', space=smem, size = 0x200, scoped, tag = 'input window, operand 0, single buffered']
    #allocation3 [shape = 's32[1]{0}', space=sflag, size = 0x4, scoped, tag = 'scoped memory for tpu_custom_call.1']
    %7 = vsyncpa [#allocation3], 0
    // Predicated region
    $region2: #{tpu_custom_call.1} parent=1 // pred_check
      _
    $region3: #{tpu_custom_call.1} parent=1 // pred_check_branch
      %9 = sbr.rel (0) target = $region5
    $region4: #{tpu_custom_call.1} parent=1 // pred_region
      %s11 = ssub.s32 16, 16
      %12 = vsyncadd [#allocation3], %s11
      %s14 = sshll.u32 %s0, 4
      %s15 = int_to_ptr.vmem [resolvable:$true] %s14
      %17 = dma.vmem_to_smem %s15, 16, [#allocation2], [#allocation3]
    $region5: #{tpu_custom_call.1} parent=1 // pred_fallthru
      _
    // Predicated region
    $region6: #{tpu_custom_call.1} parent=1 // pred_check
      _
    $region7: #{tpu_custom_call.1} parent=1 // pred_check_branch
      %19 = sbr.rel (0) target = $region9
    $region8: #{tpu_custom_call.1} parent=1 // pred_region
      _
    $region9: #{tpu_custom_call.1} parent=1 // pred_fallthru
      _
    // Predicated region
    $region10: #{tpu_custom_call.1} parent=1 // pred_check
      _
    $region11: #{tpu_custom_call.1} parent=1 // pred_check_branch
      %21 = sbr.rel (0) target = $region13
    $region12: #{tpu_custom_call.1} parent=1 // pred_region
      %22 = dma.done [#allocation3], 16
    $region13: #{tpu_custom_call.1} parent=1 // pred_fallthru
      _
    %23 = sfence
    %v24 = vld [vmem:[%s1] sm:$0xff]
    %v25 = vld [vmem:[%s1 + $0x8] sm:$0xff]
    %v26 = vcvt.f32.s32.to.zero.pseudo %v24
    %v27 = vcvt.f32.s32.to.zero.pseudo %v25
    %s28 = sld [smem:[#allocation2]]
    %v29 = vstv %s28
    %vm30 = vcmp.eq.s32.totalorder %v26, 1
    %vm31 = vcmp.eq.s32.totalorder %v27, 1
    %s32 = sld [smem:[#allocation2 + $0x1]]
    %v33 = vstv %s32
    %v34 = vsel %vm30, %v33, %v29
    %v35 = vsel %vm31, %v33, %v29
    %v36 = vlaneseq
    %v37 = vand.u32 %v36, 127
    %vm38 = vcmp.eq.s32.totalorder %v37, 0
    %40 = vset.pattern.permute.xlu0 0
    %41 = vperm.xlu0 %40, %v34
    %v42 = vpop.permute.xlu0 %41
    %45 = vset.pattern.permute.xlu0 0
    %46 = vperm.xlu0 %45, %v35
    %v47 = vpop.permute.xlu0 %46
    %v49 = vsel %vm38, 1.0, %v42
    %v50 = vsel %vm38, 1.0, %v47
    %v51 = vmul.f32 %v24, %v49
    %v52 = vmul.f32 %v25, %v50
    %vm53 = vcmask 39936
    %54 = vst.msk [vmem:[%s2] sm:$0xff] %vm53, %v51
    %55 = vst.msk [vmem:[%s2 + $0x8] sm:$0xff] %vm53, %v52
    // Predicated region
    $region14: #{tpu_custom_call.1} parent=1 // pred_check
      _
    $region15: #{tpu_custom_call.1} parent=1 // pred_check_branch
      %57 = sbr.rel (0) target = $region17
    $region16: #{tpu_custom_call.1} parent=1 // pred_region
      _
    $region17: #{tpu_custom_call.1} parent=1 // pred_fallthru
      _
    // Predicated region
    $region18: #{tpu_custom_call.1} parent=1 // pred_check
      _
    $region19: #{tpu_custom_call.1} parent=1 // pred_check_branch
      %59 = sbr.rel (0) target = $region21
    $region20: #{tpu_custom_call.1} parent=1 // pred_region
      _
    $region21: #{tpu_custom_call.1} parent=1 // pred_fallthru
      _
    %60 = vsyncpa [#allocation3], 1

</llo_original>
